<compile_context>
chip_gen: v7x
topology: tpu7x:2x2x1
jax: 0.10.0
libtpu: 0.0.40
codegen_flags: <defaults>
</compile_context>

<pallas_src>
import jax
import jax.numpy as jnp
from jax.experimental import pallas as pl
from jax.experimental.pallas import tpu as pltpu

NUM_FEATURES = 8   # forward flattens to (1, 8); fc starts with Linear(8, 4)
FC_HIDDEN = 4
EMB_DIM = 2
PAD = 8            # activations / fc matrices padded to 8 rows (sublane tile)
LANE = 128
DEFAULT_BLOCK_B = 32768   # ~1 MiB f32 X tile; fits VMEM everywhere (v5e..v7x)


def _round_up(n, m):
    return ((n + m - 1) // m) * m


def _cdiv(a, b):
    return (a + b - 1) // b


def network2_kernel(w_ref, xt_ref, out_ref):
    """Fused Network2 forward on one (8, B_tile) activation tile.

    w_ref : (24, 128) parameter slab, resident across the grid:
        [0:8 , 0:8]  A     = M3 @ M2 @ M1 + I   (fused conv chain + residual)
        [0:8 , 8  ]  c     = M3 @ M2 @ b1 + M3 @ b2 + b3
        [0   , 9  ]  a1    PReLU slope after the residual
        [1   , 9  ]  a2    PReLU slope inside fc
        [8:16, 0:8]  Wfc1  zero-padded (4,8) -> (8,8)
        [8:16, 8  ]  bfc1  zero-padded (4,)  -> (8,)
        [16:24,0:8]  Wfc2  zero-padded (2,4) -> (8,8)
        [16:24,8  ]  bfc2  zero-padded (2,)  -> (8,)
    xt_ref : (8, B_tile)        batch on the lane axis (x transposed)
    out_ref: (EMB_DIM, B_tile)  only the live embedding rows are stored.
    """
    x = xt_ref[...].astype(jnp.float32)           # f32 right after load (v5e)

    A = w_ref[0:8, 0:8]
    c = w_ref[0:8, 8:9]
    a1 = w_ref[0:1, 9:10]
    a2 = w_ref[1:2, 9:10]
    wf1 = w_ref[8:16, 0:8]
    bf1 = w_ref[8:16, 8:9]
    wf2 = w_ref[16:24, 0:8]
    bf2 = w_ref[16:24, 8:9]

    # conv1 -> conv2 -> conv3 + residual (fused to one matmul), then PReLU.
    s = jnp.dot(A, x, preferred_element_type=jnp.float32) + c
    y = jnp.where(s > 0, s, a1 * s)

    # fc: Linear(8,4) -> PReLU -> Linear(4, emb_dim)  (rows padded to 8; pad
    # rows stay exactly zero because their weights and biases are zero).
    z = jnp.dot(wf1, y, preferred_element_type=jnp.float32) + bf1
    z = jnp.where(z > 0, z, a2 * z)
    e = jnp.dot(wf2, z, preferred_element_type=jnp.float32) + bf2   # (8, Bt)

    out_ref[...] = e[0:EMB_DIM, :]                # only 2 rows hit HBM


def _build_param_slab(params):
    (w1, b1, w2, b2, w3, b3, a1, wfc1, bfc1, a2, wfc2, bfc2) = params
    C = NUM_FEATURES

    # Effective center-tap matrices of the dilated convs on an L=1 input:
    # k=3/pad=2 -> tap 1, k=5/pad=4 -> tap 2, k=7/pad=6 -> tap 3.
    M1 = jnp.asarray(w1, jnp.float32)[:, :, 1]
    M2 = jnp.asarray(w2, jnp.float32)[:, :, 2]
    M3 = jnp.asarray(w3, jnp.float32)[:, :, 3]
    b1 = jnp.asarray(b1, jnp.float32)
    b2 = jnp.asarray(b2, jnp.float32)
    b3 = jnp.asarray(b3, jnp.float32)

    # Fuse the affine conv chain + residual into one matrix / bias.
    A = M3 @ M2 @ M1 + jnp.eye(C, dtype=jnp.float32)
    c = M3 @ (M2 @ b1 + b2) + b3

    slab = jnp.zeros((3 * PAD, LANE), jnp.float32)
    slab = slab.at[0:C, 0:C].set(A)
    slab = slab.at[0:C, C].set(c)
    slab = slab.at[0, C + 1].set(jnp.asarray(a1, jnp.float32).reshape(()))
    slab = slab.at[1, C + 1].set(jnp.asarray(a2, jnp.float32).reshape(()))
    slab = slab.at[PAD:PAD + FC_HIDDEN, 0:C].set(jnp.asarray(wfc1, jnp.float32))
    slab = slab.at[PAD:PAD + FC_HIDDEN, C].set(jnp.asarray(bfc1, jnp.float32))
    slab = slab.at[2 * PAD:2 * PAD + EMB_DIM, 0:FC_HIDDEN].set(
        jnp.asarray(wfc2, jnp.float32))
    slab = slab.at[2 * PAD:2 * PAD + EMB_DIM, C].set(
        jnp.asarray(bfc2, jnp.float32))
    return slab


def _choose_tiling(batch, block_b_cap):
    """Pad B only to a multiple of LANE; pick a tile that divides b_pad."""
    b_pad = _round_up(max(batch, 1), LANE)
    n_steps = _cdiv(b_pad, block_b_cap)
    # v7x megacore: give both TensorCores work once the batch is big enough
    # that the (< 2*LANE) extra padded columns are negligible.
    if n_steps == 1 and b_pad >= 16 * LANE:
        n_steps = 2
    bb = _round_up(_cdiv(b_pad, n_steps), LANE)
    return n_steps * bb, bb


def _network2_pallas(slab, xt, block_b):
    b_pad = xt.shape[1]
    grid = (b_pad // block_b,)
    itemsize = jnp.dtype(xt.dtype).itemsize
    cost = pl.CostEstimate(
        flops=2 * 3 * PAD * PAD * b_pad,
        transcendentals=0,
        bytes_accessed=(slab.size * 4 + xt.size * itemsize
                        + EMB_DIM * b_pad * 4))
    return pl.pallas_call(
        network2_kernel,
        out_shape=jax.ShapeDtypeStruct((EMB_DIM, b_pad), jnp.float32),
        grid=grid,
        in_specs=[
            pl.BlockSpec((3 * PAD, LANE), lambda i: (0, 0)),   # resident slab
            pl.BlockSpec((PAD, block_b), lambda i: (0, i)),    # X^T tile
        ],
        out_specs=pl.BlockSpec((EMB_DIM, block_b), lambda i: (0, i)),
        compiler_params=pltpu.CompilerParams(
            dimension_semantics=("parallel",),                 # megacore on v7x
        ),
        cost_estimate=cost,
    )(slab, xt)


def make_network2_forward(params, *, block_b=DEFAULT_BLOCK_B,
                          activation_dtype=jnp.float32):
    """Builds the fused parameter slab ONCE and returns two jitted forwards.

    forward(x)    : x reshapeable to (B, NUM_FEATURES)  -> (B, EMB_DIM)
    forward_t(xt) : xt of shape (NUM_FEATURES, B), already transposed
                    (skips the wrapper-side HBM transpose pass) -> (B, EMB_DIM)
    """
    slab = jax.device_put(_build_param_slab(params))

    def _run(xt_pad, batch, bb):
        out = _network2_pallas(slab, xt_pad, bb)          # (EMB_DIM, b_pad)
        return out[:, :batch].T                           # (B, EMB_DIM), f32

    @jax.jit
    def forward(x):
        x = jnp.asarray(x, jnp.float32).reshape(-1, NUM_FEATURES)
        batch = x.shape[0]
        b_pad, bb = _choose_tiling(batch, block_b)
        xt = jnp.zeros((NUM_FEATURES, b_pad), activation_dtype)
        xt = xt.at[:, :batch].set(x.T.astype(activation_dtype))
        return _run(xt, batch, bb)

    @jax.jit
    def forward_t(xt):
        xt = jnp.asarray(xt).reshape(NUM_FEATURES, -1)
        batch = xt.shape[1]
        b_pad, bb = _choose_tiling(batch, block_b)
        xt_pad = jnp.zeros((NUM_FEATURES, b_pad), activation_dtype)
        xt_pad = xt_pad.at[:, :batch].set(xt.astype(activation_dtype))
        return _run(xt_pad, batch, bb)

    return forward, forward_t


def network2_forward(x, params, **kwargs):
    """One-shot convenience (rebuilds the slab; prefer make_network2_forward)."""
    fwd, _ = make_network2_forward(params, **kwargs)
    return fwd(x)


if __name__ == "__main__":
    C = NUM_FEATURES
    key = jax.random.PRNGKey(0)
    ks = jax.random.split(key, 12)

    # Deterministic synthetic parameters (shapes follow the torch __init__).
    w1 = jax.random.normal(ks[0], (C, C, 3), jnp.float32) * 0.2
    b1 = jax.random.normal(ks[1], (C,), jnp.float32) * 0.1
    w2 = jax.random.normal(ks[2], (C, C, 5), jnp.float32) * 0.2
    b2 = jax.random.normal(ks[3], (C,), jnp.float32) * 0.1
    w3 = jax.random.normal(ks[4], (C, C, 7), jnp.float32) * 0.2
    b3 = jax.random.normal(ks[5], (C,), jnp.float32) * 0.1
    a1 = jnp.array(0.25, jnp.float32)            # nn.PReLU() default init
    wfc1 = jax.random.normal(ks[6], (4, C), jnp.float32) * 0.3
    bfc1 = jax.random.normal(ks[7], (4,), jnp.float32) * 0.1
    a2 = jnp.array(0.25, jnp.float32)
    wfc2 = jax.random.normal(ks[8], (EMB_DIM, 4), jnp.float32) * 0.3
    bfc2 = jax.random.normal(ks[9], (EMB_DIM,), jnp.float32) * 0.1
    params = (w1, b1, w2, b2, w3, b3, a1, wfc1, bfc1, a2, wfc2, bfc2)

    # Pure-JAX reference emulating the *full* dilated Conv1d on the zero-padded
    # length-1 input (validates the center-tap + affine-fusion reduction).
    def conv1d_len1(xvec, w, b, pad, dil):
        L = 1 + 2 * pad
        padded = jnp.zeros((w.shape[1], L), jnp.float32).at[:, pad].set(xvec)
        k = w.shape[2]
        taps = jnp.stack([padded[:, j * dil] for j in range(k)], axis=-1)
        return jnp.einsum("oik,ik->o", w, taps) + b

    def ref_forward_single(xvec):
        h = conv1d_len1(xvec, w1, b1, pad=2, dil=2)
        h = conv1d_len1(h, w2, b2, pad=4, dil=2)
        h = conv1d_len1(h, w3, b3, pad=6, dil=2)
        s = h + xvec
        y = jnp.where(s > 0, s, a1 * s)
        z = y @ wfc1.T + bfc1
        z = jnp.where(z > 0, z, a2 * z)
        return z @ wfc2.T + bfc2

    # Small block_b here so the test exercises a multi-step grid + padding.
    fwd, fwd_t = make_network2_forward(params, block_b=256)

    # 1) Single sample — exact torch forward semantics (output (1, emb_dim)).
    x1 = jax.random.normal(ks[10], (C,), jnp.float32)
    out1 = jax.block_until_ready(fwd(x1))
    ref1 = ref_forward_single(x1).reshape(1, EMB_DIM)
    assert out1.shape == (1, EMB_DIM)
    assert jnp.allclose(out1, ref1, atol=1e-4, rtol=1e-4), (out1, ref1)

    # 2) Small batch — B=600, tile 256 -> b_pad=768, grid=3.
    B = 600
    xb = jax.random.normal(ks[11], (B, C), jnp.float32)
    outb = jax.block_until_ready(fwd(xb))
    refb = jax.vmap(ref_forward_single)(xb)
    assert outb.shape == (B, EMB_DIM)
    assert jnp.allclose(outb, refb, atol=1e-4, rtol=1e-4)

    # 3) Pre-transposed fast path (no wrapper-side HBM transpose pass).
    outt = jax.block_until_ready(fwd_t(xb.T))
    assert outt.shape == (B, EMB_DIM)
    assert jnp.allclose(outt, refb, atol=1e-4, rtol=1e-4)

    # 4) bf16 activation boundary (bandwidth option for v5e/v6e), default tile.
    fwd_bf16, _ = make_network2_forward(params, activation_dtype=jnp.bfloat16)
    outh = jax.block_until_ready(fwd_bf16(xb))
    assert outh.shape == (B, EMB_DIM)
    assert jnp.allclose(outh, refb, atol=5e-2, rtol=5e-2)

    print("KERNEL_OK")
</pallas_src>

<mosaic_0001>
module attributes {stable_mosaic.version = 11 : i64} {
  func.func @network2_kernel(%arg0: i32, %arg1: memref<24x128xf32, #tpu.memory_space<vmem>>, %arg2: memref<8x128xf32, #tpu.memory_space<vmem>>, %arg3: memref<2x128xf32, #tpu.memory_space<vmem>>) attributes {dimension_semantics = [#tpu.dimension_semantics<parallel>], iteration_bounds = array<i64: 1>, scalar_prefetch = 0 : i64, scratch_operands = 0 : i64, tpu.core_type = #tpu.core_type<tc>, window_params = [{pipeline_mode = #tpu.pipeline_mode<synchronous>, transform_indices = @transform_0, window_bounds = array<i64: 24, 128>}, {transform_indices = @transform_1, window_bounds = array<i64: 8, 128>}, {transform_indices = @transform_2, window_bounds = array<i64: 2, 128>}]} {
    %c0 = arith.constant 0 : index
    %c0_0 = arith.constant 0 : index
    %0 = vector.load %arg2[%c0, %c0_0] : memref<8x128xf32, #tpu.memory_space<vmem>>, vector<8x128xf32>
    %c0_1 = arith.constant 0 : index
    %c0_2 = arith.constant 0 : index
    %1 = vector.load %arg1[%c0_1, %c0_2] : memref<24x128xf32, #tpu.memory_space<vmem>>, vector<8x8xf32>
    %c0_3 = arith.constant 0 : index
    %c8 = arith.constant 8 : index
    %2 = vector.load %arg1[%c0_3, %c8] : memref<24x128xf32, #tpu.memory_space<vmem>>, vector<8x1xf32>
    %c0_4 = arith.constant 0 : index
    %c9 = arith.constant 9 : index
    %3 = vector.load %arg1[%c0_4, %c9] : memref<24x128xf32, #tpu.memory_space<vmem>>, vector<1x1xf32>
    %c1 = arith.constant 1 : index
    %c9_5 = arith.constant 9 : index
    %4 = vector.load %arg1[%c1, %c9_5] : memref<24x128xf32, #tpu.memory_space<vmem>>, vector<1x1xf32>
    %c8_6 = arith.constant 8 : index
    %c0_7 = arith.constant 0 : index
    %5 = vector.load %arg1[%c8_6, %c0_7] : memref<24x128xf32, #tpu.memory_space<vmem>>, vector<8x8xf32>
    %c8_8 = arith.constant 8 : index
    %c8_9 = arith.constant 8 : index
    %6 = vector.load %arg1[%c8_8, %c8_9] : memref<24x128xf32, #tpu.memory_space<vmem>>, vector<8x1xf32>
    %c16 = arith.constant 16 : index
    %c0_10 = arith.constant 0 : index
    %7 = vector.load %arg1[%c16, %c0_10] : memref<24x128xf32, #tpu.memory_space<vmem>>, vector<8x8xf32>
    %c16_11 = arith.constant 16 : index
    %c8_12 = arith.constant 8 : index
    %8 = vector.load %arg1[%c16_11, %c8_12] : memref<24x128xf32, #tpu.memory_space<vmem>>, vector<8x1xf32>
    %cst = arith.constant dense<0.000000e+00> : vector<8x128xf32>
    %9 = tpu.matmul %1, %0, %cst {dimension_numbers = #tpu.dot_dimension_numbers<[1], [0], [0], [1], [0, 0, 1, 1], [], []>} : vector<8x8xf32>, vector<8x128xf32>, vector<8x128xf32> -> vector<8x128xf32>
    %10 = vector.broadcast %2 : vector<8x1xf32> to vector<8x128xf32>
    %11 = arith.addf %9, %10 : vector<8x128xf32>
    %cst_13 = arith.constant 0.000000e+00 : f32
    %12 = vector.broadcast %cst_13 : f32 to vector<8x128xf32>
    %13 = arith.cmpf ogt, %11, %12 : vector<8x128xf32>
    %14 = vector.broadcast %3 : vector<1x1xf32> to vector<8x128xf32>
    %15 = arith.mulf %14, %11 : vector<8x128xf32>
    %16 = arith.select %13, %11, %15 : vector<8x128xi1>, vector<8x128xf32>
    %cst_14 = arith.constant dense<0.000000e+00> : vector<8x128xf32>
    %17 = tpu.matmul %5, %16, %cst_14 {dimension_numbers = #tpu.dot_dimension_numbers<[1], [0], [0], [1], [0, 0, 1, 1], [], []>} : vector<8x8xf32>, vector<8x128xf32>, vector<8x128xf32> -> vector<8x128xf32>
    %18 = vector.broadcast %6 : vector<8x1xf32> to vector<8x128xf32>
    %19 = arith.addf %17, %18 : vector<8x128xf32>
    %cst_15 = arith.constant 0.000000e+00 : f32
    %20 = vector.broadcast %cst_15 : f32 to vector<8x128xf32>
    %21 = arith.cmpf ogt, %19, %20 : vector<8x128xf32>
    %22 = vector.broadcast %4 : vector<1x1xf32> to vector<8x128xf32>
    %23 = arith.mulf %22, %19 : vector<8x128xf32>
    %24 = arith.select %21, %19, %23 : vector<8x128xi1>, vector<8x128xf32>
    %cst_16 = arith.constant dense<0.000000e+00> : vector<8x128xf32>
    %25 = tpu.matmul %7, %24, %cst_16 {dimension_numbers = #tpu.dot_dimension_numbers<[1], [0], [0], [1], [0, 0, 1, 1], [], []>} : vector<8x8xf32>, vector<8x128xf32>, vector<8x128xf32> -> vector<8x128xf32>
    %26 = vector.broadcast %8 : vector<8x1xf32> to vector<8x128xf32>
    %27 = arith.addf %25, %26 : vector<8x128xf32>
    %28 = vector.extract_strided_slice %27 {offsets = [0, 0], sizes = [2, 128], strides = [1, 1]} : vector<8x128xf32> to vector<2x128xf32>
    %c0_17 = arith.constant 0 : index
    %c0_18 = arith.constant 0 : index
    %29 = vector.load %arg3[%c0_17, %c0_18] : memref<2x128xf32, #tpu.memory_space<vmem>>, vector<2x128xf32>
    tpu.vector_store %arg3[%c0_17, %c0_18], %28 {strides = array<i32>} : memref<2x128xf32, #tpu.memory_space<vmem>>, vector<2x128xf32>,
    return
  }
  func.func @transform_0(%arg0: i32) -> (i32, i32) {
    %c0_i32 = arith.constant 0 : i32
    %c0_i32_0 = arith.constant 0 : i32
    %c0_i32_1 = arith.constant 0 : i32
    return %c0_i32, %c0_i32_0 : i32, i32
  }
  func.func @transform_1(%arg0: i32) -> (i32, i32) {
    %c0_i32 = arith.constant 0 : i32
    %c0_i32_0 = arith.constant 0 : i32
    return %c0_i32, %arg0 : i32, i32
  }
  func.func @transform_2(%arg0: i32) -> (i32, i32) {
    %c0_i32 = arith.constant 0 : i32
    %c0_i32_0 = arith.constant 0 : i32
    return %c0_i32, %arg0 : i32, i32
  }
}

</mosaic_0001>

<llo_original>
// kernel: forward.1
$region0: #{forward.1}
  #allocation0 [shape = 'u32[]', space=smem, size = 0x4, offset = 0x4, fixed_abs, tag = 'smem constant byte address 0x4 - core index']
  #allocation1 [shape = 'u32[144,128]{1,0:T(1,128)}', space=vmem, size = 0x12000, scoped, tag = 'internal scratch']
  %s0 = inlined_call_operand.vmem [shape: f32[24,128], index: 0, kind: input, shape index: {}]
  %s1 = inlined_call_operand.vmem [shape: f32[8,128], index: 1, kind: input, shape index: {}]
  %s2 = inlined_call_operand.vmem [shape: f32[2,128], index: 2, kind: output, shape index: {}]
  %s3 = sld [smem:[#allocation0]]
  $region18: #{forward.1} parent=0
    _
  %s5 = ssub.s32 1, %s3
  %s6 = scalar_select 0, %s5, %s3
  // Predicated region
  $region2: #{forward.1} parent=0 // pred_check
    _
  $region3: #{forward.1} parent=0 // pred_check_branch
    %8 = sbr.rel (0) target = $region5
  $region4: #{forward.1} parent=0 // pred_region
    _
  $region5: #{forward.1} parent=0 // pred_fallthru
    _
  // Predicated region
  $region6: #{forward.1} parent=0 // pred_check
    _
  $region7: #{forward.1} parent=0 // pred_check_branch
    %10 = sbr.rel (0) target = $region9
  $region8: #{forward.1} parent=0 // pred_region
    _
  $region9: #{forward.1} parent=0 // pred_fallthru
    _
  %v11 = vld [vmem:[%s1] sm:$0xff]
  %v12 = vld [vmem:[%s0] sm:$0xff]
  %v13 = vld [vmem:[%s0] sm:$0x1]
  %v14 = vld [vmem:[%s0 + $0x1] sm:$0x1]
  %v15 = vld [vmem:[%s0 + $0x8] sm:$0xff]
  %v16 = vld [vmem:[%s0 + $0x10] sm:$0xff]
  %18 = vset.pattern.permute.xlu0 8
  %19 = vperm.xlu0 %18, %v12
  %v20 = vpop.permute.xlu0 %19
  %vm22 = vcmask 64512
  %v23 = vsel %vm22, %v12, 0
  %25 = vmatprep.subr.mxu0 0.0
  %26 = vmatpush1.msra.mxu0 %v11
  %27 = vmatprep.subr.mxu0 0.0
  %28 = vmatpush1.msra.mxu0 0.0
  %29 = vmatprep.subr.mxu0 0.0
  %30 = vmatpush1.msra.mxu0 0.0
  %31 = vmatprep.subr.mxu0 0.0
  %32 = vmatpush1.msra.mxu0 0.0
  %33 = vmatprep.subr.mxu0 0.0
  %34 = vmatpush1.msra.mxu0 0.0
  %35 = vmatprep.subr.mxu0 0.0
  %36 = vmatpush1.msra.mxu0 0.0
  %37 = vmatprep.subr.mxu0 0.0
  %38 = vmatpush1.msra.mxu0 0.0
  %39 = vmatprep.subr.mxu0 0.0
  %40 = vmatpush1.msra.mxu0 0.0
  %41 = vmatprep.subr.mxu0 0.0
  %42 = vmatpush1.msra.mxu0 0.0
  %43 = vmatprep.subr.mxu0 0.0
  %44 = vmatpush1.msra.mxu0 0.0
  %45 = vmatprep.subr.mxu0 0.0
  %46 = vmatpush1.msra.mxu0 0.0
  %47 = vmatprep.subr.mxu0 0.0
  %48 = vmatpush1.msra.mxu0 0.0
  %49 = vmatprep.subr.mxu0 0.0
  %50 = vmatpush1.msra.mxu0 0.0
  %51 = vmatprep.subr.mxu0 0.0
  %52 = vmatpush1.msra.mxu0 0.0
  %53 = vmatprep.subr.mxu0 0.0
  %54 = vmatpush1.msra.mxu0 0.0
  %55 = vmatprep.subr.mxu0 0.0
  %56 = vmatpush1.msra.mxu0 0.0
  %57 = vmatprep.subr.mxu0 0.0
  %58 = vmatpush1.msra.mxu0 0.0
  %59 = vmatprep.subr.mxu0 0.0
  %60 = vmatpush1.msra.mxu0 0.0
  %61 = vmatprep.subr.mxu0 0.0
  %62 = vmatpush1.msra.mxu0 0.0
  %63 = vmatprep.subr.mxu0 0.0
  %64 = vmatpush1.msra.mxu0 0.0
  %65 = vmatprep.subr.mxu0 0.0
  %66 = vmatpush1.msra.mxu0 0.0
  %67 = vmatprep.subr.mxu0 0.0
  %68 = vmatpush1.msra.mxu0 0.0
  %69 = vmatprep.subr.mxu0 0.0
  %70 = vmatpush1.msra.mxu0 0.0
  %71 = vmatprep.subr.mxu0 0.0
  %72 = vmatpush1.msra.mxu0 0.0
  %73 = vmatprep.subr.mxu0 0.0
  %74 = vmatpush1.msra.mxu0 0.0
  %75 = vmatprep.subr.mxu0 0.0
  %76 = vmatpush1.msra.mxu0 0.0
  %77 = vmatprep.subr.mxu0 0.0
  %78 = vmatpush1.msra.mxu0 0.0
  %79 = vmatprep.subr.mxu0 0.0
  %80 = vmatpush1.msra.mxu0 0.0
  %81 = vmatprep.subr.mxu0 0.0
  %82 = vmatpush1.msra.mxu0 0.0
  %83 = vmatprep.subr.mxu0 0.0
  %84 = vmatpush1.msra.mxu0 0.0
  %85 = vmatprep.subr.mxu0 0.0
  %86 = vmatpush1.msra.mxu0 0.0
  %87 = vmatprep.subr.mxu0 0.0
  %88 = vmatpush1.msra.mxu0 0.0
  %89 = vmatprep.mubr.f32.mxu0 0.0
  %90 = vmatmul.mubr.f32.gmra.mrb[0].mxu0 %v23
  %v91 = vpop.f32.mrb[0].mxu0
  %v92 = vadd.f32 %v20, %v91
  %v93 = vpop.f32.mrb[0].mxu0
  %94 = vdwg.mxu0
  %vm95 = vcmp.gt.f32.partialorder %v92, 0.0
  %97 = vrot.lane.b32.xlu0 %v13, 119
  %v98 = vpop.permute.xlu0 %97
  %s99 = vtos %v98
  %v100 = vstv %s99
  %v102 = vmul.f32 %v100, %v92
  %v103 = vsel %vm95, %v92, %v102
  %105 = vset.pattern.permute.xlu0 8
  %106 = vperm.xlu0 %105, %v15
  %v107 = vpop.permute.xlu0 %106
  %v109 = vsel %vm22, %v15, 0
  %111 = vmatprep.subr.mxu0 0.0
  %112 = vmatpush1.msra.mxu0 %v103
  %113 = vmatprep.subr.mxu0 0.0
  %114 = vmatpush1.msra.mxu0 0.0
  %115 = vmatprep.subr.mxu0 0.0
  %116 = vmatpush1.msra.mxu0 0.0
  %117 = vmatprep.subr.mxu0 0.0
  %118 = vmatpush1.msra.mxu0 0.0
  %119 = vmatprep.subr.mxu0 0.0
  %120 = vmatpush1.msra.mxu0 0.0
  %121 = vmatprep.subr.mxu0 0.0
  %122 = vmatpush1.msra.mxu0 0.0
  %123 = vmatprep.subr.mxu0 0.0
  %124 = vmatpush1.msra.mxu0 0.0
  %125 = vmatprep.subr.mxu0 0.0
  %126 = vmatpush1.msra.mxu0 0.0
  %127 = vmatprep.subr.mxu0 0.0
  %128 = vmatpush1.msra.mxu0 0.0
  %129 = vmatprep.subr.mxu0 0.0
  %130 = vmatpush1.msra.mxu0 0.0
  %131 = vmatprep.subr.mxu0 0.0
  %132 = vmatpush1.msra.mxu0 0.0
  %133 = vmatprep.subr.mxu0 0.0
  %134 = vmatpush1.msra.mxu0 0.0
  %135 = vmatprep.subr.mxu0 0.0
  %136 = vmatpush1.msra.mxu0 0.0
  %137 = vmatprep.subr.mxu0 0.0
  %138 = vmatpush1.msra.mxu0 0.0
  %139 = vmatprep.subr.mxu0 0.0
  %140 = vmatpush1.msra.mxu0 0.0
  %141 = vmatprep.subr.mxu0 0.0
  %142 = vmatpush1.msra.mxu0 0.0
  %143 = vmatprep.subr.mxu0 0.0
  %144 = vmatpush1.msra.mxu0 0.0
  %145 = vmatprep.subr.mxu0 0.0
  %146 = vmatpush1.msra.mxu0 0.0
  %147 = vmatprep.subr.mxu0 0.0
  %148 = vmatpush1.msra.mxu0 0.0
  %149 = vmatprep.subr.mxu0 0.0
  %150 = vmatpush1.msra.mxu0 0.0
  %151 = vmatprep.subr.mxu0 0.0
  %152 = vmatpush1.msra.mxu0 0.0
  %153 = vmatprep.subr.mxu0 0.0
  %154 = vmatpush1.msra.mxu0 0.0
  %155 = vmatprep.subr.mxu0 0.0
  %156 = vmatpush1.msra.mxu0 0.0
  %157 = vmatprep.subr.mxu0 0.0
  %158 = vmatpush1.msra.mxu0 0.0
  %159 = vmatprep.subr.mxu0 0.0
  %160 = vmatpush1.msra.mxu0 0.0
  %161 = vmatprep.subr.mxu0 0.0
  %162 = vmatpush1.msra.mxu0 0.0
  %163 = vmatprep.subr.mxu0 0.0
  %164 = vmatpush1.msra.mxu0 0.0
  %165 = vmatprep.subr.mxu0 0.0
  %166 = vmatpush1.msra.mxu0 0.0
  %167 = vmatprep.subr.mxu0 0.0
  %168 = vmatpush1.msra.mxu0 0.0
  %169 = vmatprep.subr.mxu0 0.0
  %170 = vmatpush1.msra.mxu0 0.0
  %171 = vmatprep.subr.mxu0 0.0
  %172 = vmatpush1.msra.mxu0 0.0
  %173 = vmatprep.subr.mxu0 0.0
  %174 = vmatpush1.msra.mxu0 0.0
  %175 = vmatprep.mubr.f32.mxu0 0.0
  %176 = vmatmul.mubr.f32.gmra.mrb[0].mxu0 %v109
  %v177 = vpop.f32.mrb[0].mxu0
  %v178 = vadd.f32 %v107, %v177
  %v179 = vpop.f32.mrb[0].mxu0
  %180 = vdwg.mxu0
  %vm181 = vcmp.gt.f32.partialorder %v178, 0.0
  %183 = vrot.lane.b32.xlu0 %v14, 119
  %v184 = vpop.permute.xlu0 %183
  %s185 = vtos %v184
  %v186 = vstv %s185
  %v188 = vmul.f32 %v186, %v178
  %v189 = vsel %vm181, %v178, %v188
  %191 = vset.pattern.permute.xlu0 8
  %192 = vperm.xlu0 %191, %v16
  %v193 = vpop.permute.xlu0 %192
  %v195 = vsel %vm22, %v16, 0
  %197 = vmatprep.subr.mxu0 0.0
  %198 = vmatpush1.msra.mxu0 %v189
  %199 = vmatprep.subr.mxu0 0.0
  %200 = vmatpush1.msra.mxu0 0.0
  %201 = vmatprep.subr.mxu0 0.0
  %202 = vmatpush1.msra.mxu0 0.0
  %203 = vmatprep.subr.mxu0 0.0
  %204 = vmatpush1.msra.mxu0 0.0
  %205 = vmatprep.subr.mxu0 0.0
  %206 = vmatpush1.msra.mxu0 0.0
  %207 = vmatprep.subr.mxu0 0.0
  %208 = vmatpush1.msra.mxu0 0.0
  %209 = vmatprep.subr.mxu0 0.0
  %210 = vmatpush1.msra.mxu0 0.0
  %211 = vmatprep.subr.mxu0 0.0
  %212 = vmatpush1.msra.mxu0 0.0
  %213 = vmatprep.subr.mxu0 0.0
  %214 = vmatpush1.msra.mxu0 0.0
  %215 = vmatprep.subr.mxu0 0.0
  %216 = vmatpush1.msra.mxu0 0.0
  %217 = vmatprep.subr.mxu0 0.0
  %218 = vmatpush1.msra.mxu0 0.0
  %219 = vmatprep.subr.mxu0 0.0
  %220 = vmatpush1.msra.mxu0 0.0
  %221 = vmatprep.subr.mxu0 0.0
  %222 = vmatpush1.msra.mxu0 0.0
  %223 = vmatprep.subr.mxu0 0.0
  %224 = vmatpush1.msra.mxu0 0.0
  %225 = vmatprep.subr.mxu0 0.0
  %226 = vmatpush1.msra.mxu0 0.0
  %227 = vmatprep.subr.mxu0 0.0
  %228 = vmatpush1.msra.mxu0 0.0
  %229 = vmatprep.subr.mxu0 0.0
  %230 = vmatpush1.msra.mxu0 0.0
  %231 = vmatprep.subr.mxu0 0.0
  %232 = vmatpush1.msra.mxu0 0.0
  %233 = vmatprep.subr.mxu0 0.0
  %234 = vmatpush1.msra.mxu0 0.0
  %235 = vmatprep.subr.mxu0 0.0
  %236 = vmatpush1.msra.mxu0 0.0
  %237 = vmatprep.subr.mxu0 0.0
  %238 = vmatpush1.msra.mxu0 0.0
  %239 = vmatprep.subr.mxu0 0.0
  %240 = vmatpush1.msra.mxu0 0.0
  %241 = vmatprep.subr.mxu0 0.0
  %242 = vmatpush1.msra.mxu0 0.0
  %243 = vmatprep.subr.mxu0 0.0
  %244 = vmatpush1.msra.mxu0 0.0
  %245 = vmatprep.subr.mxu0 0.0
  %246 = vmatpush1.msra.mxu0 0.0
  %247 = vmatprep.subr.mxu0 0.0
  %248 = vmatpush1.msra.mxu0 0.0
  %249 = vmatprep.subr.mxu0 0.0
  %250 = vmatpush1.msra.mxu0 0.0
  %251 = vmatprep.subr.mxu0 0.0
  %252 = vmatpush1.msra.mxu0 0.0
  %253 = vmatprep.subr.mxu0 0.0
  %254 = vmatpush1.msra.mxu0 0.0
  %255 = vmatprep.subr.mxu0 0.0
  %256 = vmatpush1.msra.mxu0 0.0
  %257 = vmatprep.subr.mxu0 0.0
  %258 = vmatpush1.msra.mxu0 0.0
  %259 = vmatprep.subr.mxu0 0.0
  %260 = vmatpush1.msra.mxu0 0.0
  %261 = vmatprep.mubr.f32.mxu0 0.0
  %262 = vmatmul.mubr.f32.gmra.mrb[0].mxu0 %v195
  %v263 = vpop.f32.mrb[0].mxu0
  %v264 = vadd.f32 %v193, %v263
  %v265 = vpop.f32.mrb[0].mxu0
  %266 = vdwg.mxu0
  %267 = vst [vmem:[%s2] sm:$0x3] %v264
  // Predicated region
  $region10: #{forward.1} parent=0 // pred_check
    _
  $region11: #{forward.1} parent=0 // pred_check_branch
    %269 = sbr.rel (0) target = $region13
  $region12: #{forward.1} parent=0 // pred_region
    _
  $region13: #{forward.1} parent=0 // pred_fallthru
    _
  // Predicated region
  $region14: #{forward.1} parent=0 // pred_check
    _
  $region15: #{forward.1} parent=0 // pred_check_branch
    %271 = sbr.rel (0) target = $region17
  $region16: #{forward.1} parent=0 // pred_region
    _
  $region17: #{forward.1} parent=0 // pred_fallthru
    _

</llo_original>
